<compile_context>
chip_gen: v6e
topology: v6e:2x2x1
jax: 0.10.0
libtpu: 0.0.40
codegen_flags: <defaults>
</compile_context>

<pallas_src>
import math

import numpy as np
import jax
import jax.numpy as jnp
from jax.experimental import pallas as pl
from jax.experimental.pallas import tpu as pltpu


def _round_up(v: int, m: int) -> int:
    return ((v + m - 1) // m) * m


def _query_vmem_bytes() -> int:
    """Physical per-core VMEM, with conservative fallbacks (assume v7x = 64 MiB)."""
    try:
        info = pltpu.get_tpu_info()
        for attr in ("vmem_capacity_bytes", "vmem_size_bytes", "vmem_bytes"):
            v = getattr(info, attr, None)
            if v:
                return int(v)
    except Exception:
        pass
    try:
        kind = jax.devices()[0].device_kind.lower()
        if any(t in kind for t in ("v5 lite", "v5e", "v5litepod", "v6 lite", "v6e", "trillium")):
            return 128 << 20
    except Exception:
        pass
    return 64 << 20


def _make_kernel(multi_k: bool, three_pass: bool):
    """Build the rfft matmul kernel body.

    three_pass: manual BF16_3X (== Precision.HIGH) split: x ~ x_hi + x_lo (bf16),
    W precomputed as (w_hi, w_lo) bf16 -> x@W ~ x_hi@w_hi + x_hi@w_lo + x_lo@w_hi,
    all single-pass bf16 MXU matmuls accumulating in f32.
    """

    def compute(x_ref, *w_refs):
        if three_pass:
            wh_ref, wl_ref = w_refs
            x = x_ref[...]
            if x.dtype == jnp.bfloat16:
                x_hi, x_lo = x, None            # bf16 input is exact: only 2 passes
            else:
                xf = x.astype(jnp.float32)
                x_hi = xf.astype(jnp.bfloat16)
                x_lo = (xf - x_hi.astype(jnp.float32)).astype(jnp.bfloat16)
            wh = wh_ref[...]
            wl = wl_ref[...]
            acc = jnp.dot(x_hi, wh, preferred_element_type=jnp.float32)
            acc = acc + jnp.dot(x_hi, wl, preferred_element_type=jnp.float32)
            if x_lo is not None:
                acc = acc + jnp.dot(x_lo, wh, preferred_element_type=jnp.float32)
            return acc
        else:
            (w_ref,) = w_refs
            return jnp.dot(
                x_ref[...].astype(jnp.float32),
                w_ref[...],
                precision=jax.lax.Precision.HIGHEST,   # 6-pass exact-f32 fallback path
                preferred_element_type=jnp.float32,
            )

    if multi_k:
        # Output block index is K-invariant -> o_ref stays resident across the K axis
        # and doubles as the accumulator (no scratch, no zero-init store).
        def kernel(x_ref, *rest):
            *w_refs, o_ref = rest
            part = compute(x_ref, *w_refs)
            k = pl.program_id(1)

            @pl.when(k == 0)
            def _():
                o_ref[...] = part

            @pl.when(k > 0)
            def _():
                o_ref[...] += part
    else:
        def kernel(x_ref, *rest):
            *w_refs, o_ref = rest
            o_ref[...] = compute(x_ref, *w_refs)

    return kernel


class RealFFT1:
    """JAX/Pallas equivalent of makani RealFFT1 (torch.fft.rfft wrapper)."""

    def __init__(self, nlon: int, lmax=None, mmax=None, precision: str = "high"):
        self.nlon = nlon
        self.lmax = min(lmax or self.nlon // 2 + 1, self.nlon // 2 + 1)
        self.mmax = min(mmax or self.nlon // 2 + 1, self.lmax)
        assert precision in ("high", "highest")
        self.precision = precision

        # Interleaved [re, im] output columns, padded to the lane width.
        self.npad = _round_up(2 * self.mmax, 128)

        # Generation-aware VMEM budget.
        self._phys_vmem = _query_vmem_bytes()
        if self._phys_vmem >= (96 << 20):          # 128 MiB parts (v5e / v6e)
            self._budget = 100 << 20
        else:                                       # 64 MiB parts (v7x per TC)
            self._budget = self._phys_vmem - (8 << 20)

        # ---- K (reduction) tiling so the weight block stays bounded. ----
        # Weight VMEM cost per element is 8 bytes in either mode
        # (double-buffered hi+lo bf16, or double-buffered single f32).
        w_allow = (self._budget * 3) // 5
        if 8 * nlon * self.npad <= w_allow:
            tk = nlon                               # whole DFT matrix resident; nk == 1
        else:
            tk_max = max(128, (w_allow // (8 * self.npad)) // 128 * 128)
            tk = None
            if nlon % 128 == 0:
                for cand in range(tk_max, 127, -128):
                    if nlon % cand == 0:
                        tk = cand
                        break
            if tk is None:
                # No usable multiple-of-128 divisor: zero-pad the reduction axis
                # (x columns and W rows) up to a multiple of tk instead of letting
                # tm collapse / exceeding physical VMEM.
                nk_min = -(-nlon // tk_max)
                tk = _round_up(-(-nlon // nk_min), 128)
        self.tk = tk
        self.kpad = _round_up(nlon, tk)
        self.nk = self.kpad // tk

        self._w_cache = {}
        self._weights("ortho")                      # pre-build & cache default norm

    def _weights(self, norm):
        cached = self._w_cache.get(norm)
        if cached is not None:
            return cached
        if norm == "ortho":
            scale = 1.0 / math.sqrt(self.nlon)
        elif norm == "forward":
            scale = 1.0 / self.nlon
        else:                                       # "backward" / None
            scale = 1.0
        # Host-side f64 angle math with the phase index reduced mod nlon, so cos/sin
        # keep full precision even for large nlon * mmax.
        n = np.arange(self.nlon, dtype=np.int64)[:, None]
        m = np.arange(self.mmax, dtype=np.int64)[None, :]
        ang = (2.0 * np.pi / self.nlon) * ((n * m) % self.nlon)
        w = np.zeros((self.kpad, self.npad), dtype=np.float64)     # zero K-pad rows
        w[: self.nlon, 0 : 2 * self.mmax : 2] = np.cos(ang) * scale
        w[: self.nlon, 1 : 2 * self.mmax : 2] = -np.sin(ang) * scale
        w32 = jnp.asarray(w.astype(np.float32))
        if self.precision == "high":
            w_hi = w32.astype(jnp.bfloat16)
            w_lo = (w32 - w_hi.astype(jnp.float32)).astype(jnp.bfloat16)
            weights = (w_hi, w_lo)
        else:
            weights = (w32,)
        self._w_cache[norm] = weights
        return weights

    def __call__(self, x: jnp.ndarray, norm: str = "ortho") -> jnp.ndarray:
        nlon, mmax, npad = self.nlon, self.mmax, self.npad
        tk, kpad, nk = self.tk, self.kpad, self.nk
        lead = x.shape[:-1]

        # torch.fft.rfft(x, n=nlon): truncate / zero-pad the last dim to nlon.
        if x.shape[-1] > nlon:
            x = x[..., :nlon]
        elif x.shape[-1] < nlon:
            x = jnp.pad(x, [(0, 0)] * (x.ndim - 1) + [(0, nlon - x.shape[-1])])

        # Keep bf16 inputs native (halves input DMA / VMEM); everything else -> f32.
        if x.dtype not in (jnp.float32, jnp.bfloat16):
            x = x.astype(jnp.float32)
        x2d = x.reshape(-1, nlon)
        if kpad > nlon:
            # Zero-pad the reduction axis; the matching W rows are zero as well.
            x2d = jnp.pad(x2d, ((0, 0), (0, kpad - nlon)))
        M = x2d.shape[0]
        xb = x2d.dtype.itemsize

        weights = self._weights(norm)
        n_w = len(weights)

        # ---- Row-tile selection: fill the generation-aware VMEM budget. ----
        w_blk_bytes = 8 * tk * npad                               # dbl-buffered weight
        per_row = 2 * tk * xb + 8 * npad + 4 * tk + 4 * npad      # x/out tiles + margin
        tm = max(8, min(1024, (self._budget - w_blk_bytes) // per_row // 8 * 8))
        if M <= tm:
            # Single row step, unless M is big enough that splitting in two keeps
            # both v7x TensorCores busy.
            tm = _round_up(-(-M // 2), 256) if M >= 512 else M
        elif tm >= 256:
            tm = tm // 256 * 256            # clean MXU cadence (also 128-aligned, v5e)
        n_rows = -(-M // tm)
        # NOTE: a ragged last row tile is safe only because the reduction runs along K:
        # out-of-bounds input rows feed exclusively into out-of-bounds output rows,
        # which Pallas masks on the HBM writeback.

        vmem_need = (w_blk_bytes + tm * (2 * tk * xb + 8 * npad)
                     + 2 * tm * max(tk, npad) * 4)
        vmem_limit = int(min(self._phys_vmem - (2 << 20),
                             max(vmem_need + (4 << 20), 32 << 20)))

        kernel = _make_kernel(multi_k=(nk > 1), three_pass=(n_w == 2))
        if nk > 1:
            grid = (n_rows, nk)
            x_spec = pl.BlockSpec((tm, tk), lambda i, k: (i, k))
            w_spec = pl.BlockSpec((tk, npad), lambda i, k: (k, 0))
            o_spec = pl.BlockSpec((tm, npad), lambda i, k: (i, 0))
            dims = ("parallel", "arbitrary")
        else:
            grid = (n_rows,)
            x_spec = pl.BlockSpec((tm, tk), lambda i: (i, 0))
            w_spec = pl.BlockSpec((tk, npad), lambda i: (0, 0))   # grid-invariant
            o_spec = pl.BlockSpec((tm, npad), lambda i: (i, 0))
            dims = ("parallel",)

        out = pl.pallas_call(
            kernel,
            out_shape=jax.ShapeDtypeStruct((M, npad), jnp.float32),
            grid_spec=pltpu.PrefetchScalarGridSpec(
                num_scalar_prefetch=0,
                grid=grid,
                in_specs=[x_spec] + [w_spec] * n_w,
                out_specs=o_spec,
            ),
            compiler_params=pltpu.CompilerParams(
                dimension_semantics=dims,
                vmem_limit_bytes=vmem_limit,
            ),
        )(x2d, *weights)

        # Interleaved [re, im] columns: the complex64 result is just the first
        # 2*mmax f32 columns read as (re, im) pairs (contiguous, XLA fuses this).
        pairs = out[:, : 2 * mmax].reshape(M, mmax, 2)
        y = jax.lax.complex(pairs[..., 0], pairs[..., 1])
        return y.reshape(*lead, mmax)


if __name__ == "__main__":
    key = jax.random.PRNGKey(0)
    B, C, H, W = 2, 4, 16, 16                     # nlon = W = 16 -> mmax = 9
    x = jax.random.normal(key, (B, C, H, W), dtype=jnp.float32)

    fft_mod = RealFFT1(nlon=W)
    y = fft_mod(x, norm="ortho")
    y = jax.block_until_ready(y)

    # Reference check against jnp.fft.rfft (same semantics as torch.fft.rfft).
    y_ref = jnp.fft.rfft(x, n=W, axis=-1, norm="ortho")[..., : fft_mod.mmax]
    assert y.shape == (B, C, H, fft_mod.mmax)
    assert y.dtype == jnp.complex64
    max_err = float(jnp.max(jnp.abs(y - y_ref)))
    assert jnp.allclose(y, y_ref, atol=2e-4, rtol=2e-4), f"max abs err {max_err}"

    print("KERNEL_OK")
</pallas_src>

<mosaic_0001>
module attributes {stable_mosaic.version = 11 : i64} {
  func.func @kernel(%arg0: i32, %arg1: memref<128x16xf32, #tpu.memory_space<vmem>>, %arg2: memref<16x128xbf16, #tpu.memory_space<vmem>>, %arg3: memref<16x128xbf16, #tpu.memory_space<vmem>>, %arg4: memref<128x128xf32, #tpu.memory_space<vmem>>) attributes {dimension_semantics = [#tpu.dimension_semantics<parallel>], iteration_bounds = array<i64: 1>, scalar_prefetch = 0 : i64, scratch_operands = 0 : i64, tpu.core_type = #tpu.core_type<tc>, window_params = [{transform_indices = @transform_0, window_bounds = array<i64: 128, 16>}, {pipeline_mode = #tpu.pipeline_mode<synchronous>, transform_indices = @transform_1, window_bounds = array<i64: 16, 128>}, {pipeline_mode = #tpu.pipeline_mode<synchronous>, transform_indices = @transform_2, window_bounds = array<i64: 16, 128>}, {transform_indices = @transform_3, window_bounds = array<i64: 128, 128>}]} {
    %c0 = arith.constant 0 : index
    %c0_0 = arith.constant 0 : index
    %0 = vector.load %arg1[%c0, %c0_0] : memref<128x16xf32, #tpu.memory_space<vmem>>, vector<128x16xf32>
    %1 = arith.truncf %0 : vector<128x16xf32> to vector<128x16xbf16>
    %2 = arith.extf %1 : vector<128x16xbf16> to vector<128x16xf32>
    %3 = arith.subf %0, %2 : vector<128x16xf32>
    %4 = arith.truncf %3 : vector<128x16xf32> to vector<128x16xbf16>
    %c0_1 = arith.constant 0 : index
    %c0_2 = arith.constant 0 : index
    %5 = vector.load %arg2[%c0_1, %c0_2] : memref<16x128xbf16, #tpu.memory_space<vmem>>, vector<16x128xbf16>
    %c0_3 = arith.constant 0 : index
    %c0_4 = arith.constant 0 : index
    %6 = vector.load %arg3[%c0_3, %c0_4] : memref<16x128xbf16, #tpu.memory_space<vmem>>, vector<16x128xbf16>
    %cst = arith.constant dense<0.000000e+00> : vector<128x128xf32>
    %7 = tpu.matmul %1, %5, %cst {dimension_numbers = #tpu.dot_dimension_numbers<[1], [0], [0], [1], [0, 0, 1, 1], [], []>} : vector<128x16xbf16>, vector<16x128xbf16>, vector<128x128xf32> -> vector<128x128xf32>
    %cst_5 = arith.constant dense<0.000000e+00> : vector<128x128xf32>
    %8 = tpu.matmul %1, %6, %cst_5 {dimension_numbers = #tpu.dot_dimension_numbers<[1], [0], [0], [1], [0, 0, 1, 1], [], []>} : vector<128x16xbf16>, vector<16x128xbf16>, vector<128x128xf32> -> vector<128x128xf32>
    %9 = arith.addf %7, %8 : vector<128x128xf32>
    %cst_6 = arith.constant dense<0.000000e+00> : vector<128x128xf32>
    %10 = tpu.matmul %4, %5, %cst_6 {dimension_numbers = #tpu.dot_dimension_numbers<[1], [0], [0], [1], [0, 0, 1, 1], [], []>} : vector<128x16xbf16>, vector<16x128xbf16>, vector<128x128xf32> -> vector<128x128xf32>
    %11 = arith.addf %9, %10 : vector<128x128xf32>
    %c0_7 = arith.constant 0 : index
    %c0_8 = arith.constant 0 : index
    %12 = vector.load %arg4[%c0_7, %c0_8] : memref<128x128xf32, #tpu.memory_space<vmem>>, vector<128x128xf32>
    tpu.vector_store %arg4[%c0_7, %c0_8], %11 {strides = array<i32>} : memref<128x128xf32, #tpu.memory_space<vmem>>, vector<128x128xf32>,
    return
  }
  func.func @transform_0(%arg0: i32) -> (i32, i32) {
    %c0_i32 = arith.constant 0 : i32
    %c0_i32_0 = arith.constant 0 : i32
    return %arg0, %c0_i32 : i32, i32
  }
  func.func @transform_1(%arg0: i32) -> (i32, i32) {
    %c0_i32 = arith.constant 0 : i32
    %c0_i32_0 = arith.constant 0 : i32
    %c0_i32_1 = arith.constant 0 : i32
    return %c0_i32, %c0_i32_0 : i32, i32
  }
  func.func @transform_2(%arg0: i32) -> (i32, i32) {
    %c0_i32 = arith.constant 0 : i32
    %c0_i32_0 = arith.constant 0 : i32
    %c0_i32_1 = arith.constant 0 : i32
    return %c0_i32, %c0_i32_0 : i32, i32
  }
  func.func @transform_3(%arg0: i32) -> (i32, i32) {
    %c0_i32 = arith.constant 0 : i32
    %c0_i32_0 = arith.constant 0 : i32
    return %arg0, %c0_i32 : i32, i32
  }
}

</mosaic_0001>

<llo_original>
// kernel: tpu_custom_call.1
$region0: #{tpu_custom_call.1}
  #allocation0 [shape = 'u32[]', space=smem, size = 0x4, offset = 0x4, fixed_abs, tag = 'smem constant byte address 0x4 - core index']
  #allocation1 [shape = 'u32[144,128]{1,0:T(1,128)}', space=vmem, size = 0x12000, scoped, tag = 'internal scratch']
  %s0 = inlined_call_operand.vmem [shape: f32[128,16], index: 0, kind: input, shape index: {}]
  %s1 = inlined_call_operand.vmem [shape: bf16[16,128], index: 1, kind: input, shape index: {}]
  %s2 = inlined_call_operand.vmem [shape: bf16[16,128], index: 2, kind: input, shape index: {}]
  %s3 = inlined_call_operand.hbm [shape: f32[128,128], index: 3, kind: output, shape index: {}]
  %s4 = sld [smem:[#allocation0]]
  $region22: #{tpu_custom_call.1} parent=0
    _
  %s6 = ssub.s32 1, %s4
  %s7 = scalar_select 0, %s6, %s4
  $region1: #{tpu_custom_call.1} parent=0
    #allocation2 [shape = 'u8[65536]{0}', space=vmem, size = 0x10000, scoped, tag = 'output window, operand 0, single buffered']
    #allocation3 [shape = 's32[1]{0}', space=sflag, size = 0x4, scoped, tag = 'scoped memory for tpu_custom_call.1']
    %8 = vsyncpa [#allocation3], 0
    // Predicated region
    $region2: #{tpu_custom_call.1} parent=1 // pred_check
      _
    $region3: #{tpu_custom_call.1} parent=1 // pred_check_branch
      %10 = sbr.rel (0) target = $region5
    $region4: #{tpu_custom_call.1} parent=1 // pred_region
      _
    $region5: #{tpu_custom_call.1} parent=1 // pred_fallthru
      _
    // Predicated region
    $region6: #{tpu_custom_call.1} parent=1 // pred_check
      _
    $region7: #{tpu_custom_call.1} parent=1 // pred_check_branch
      %12 = sbr.rel (0) target = $region9
    $region8: #{tpu_custom_call.1} parent=1 // pred_region
      _
    $region9: #{tpu_custom_call.1} parent=1 // pred_fallthru
      _
    // Predicated region
    $region10: #{tpu_custom_call.1} parent=1 // pred_check
      _
    $region11: #{tpu_custom_call.1} parent=1 // pred_check_branch
      %14 = sbr.rel (0) target = $region13
    $region12: #{tpu_custom_call.1} parent=1 // pred_region
      _
    $region13: #{tpu_custom_call.1} parent=1 // pred_fallthru
      _
    %v16 = vld [vmem:[%s0] sm:$0xff]
    %v17 = vld [vmem:[%s0 + $0x8] sm:$0xff]
    %v18 = vld [vmem:[%s0 + $0x10] sm:$0xff]
    %v19 = vld [vmem:[%s0 + $0x18] sm:$0xff]
    %v20 = vld [vmem:[%s0 + $0x20] sm:$0xff]
    %v21 = vld [vmem:[%s0 + $0x28] sm:$0xff]
    %v22 = vld [vmem:[%s0 + $0x30] sm:$0xff]
    %v23 = vld [vmem:[%s0 + $0x38] sm:$0xff]
    %v24 = vld [vmem:[%s0 + $0x40] sm:$0xff]
    %v25 = vld [vmem:[%s0 + $0x48] sm:$0xff]
    %v26 = vld [vmem:[%s0 + $0x50] sm:$0xff]
    %v27 = vld [vmem:[%s0 + $0x58] sm:$0xff]
    %v28 = vld [vmem:[%s0 + $0x60] sm:$0xff]
    %v29 = vld [vmem:[%s0 + $0x68] sm:$0xff]
    %v30 = vld [vmem:[%s0 + $0x70] sm:$0xff]
    %v31 = vld [vmem:[%s0 + $0x78] sm:$0xff]
    %v32 = vpack.c.bf16 %v17, %v16
    %v33 = vpack.c.bf16 %v19, %v18
    %v34 = vpack.c.bf16 %v21, %v20
    %v35 = vpack.c.bf16 %v23, %v22
    %v36 = vpack.c.bf16 %v25, %v24
    %v37 = vpack.c.bf16 %v27, %v26
    %v38 = vpack.c.bf16 %v29, %v28
    %v39 = vpack.c.bf16 %v31, %v30
    %v40 = vunpack.c.l.bf16 %v32
    %v41 = vunpack.c.h.bf16 %v32
    %v42 = vunpack.c.l.bf16 %v33
    %v43 = vunpack.c.h.bf16 %v33
    %v44 = vunpack.c.l.bf16 %v34
    %v45 = vunpack.c.h.bf16 %v34
    %v46 = vunpack.c.l.bf16 %v35
    %v47 = vunpack.c.h.bf16 %v35
    %v48 = vunpack.c.l.bf16 %v36
    %v49 = vunpack.c.h.bf16 %v36
    %v50 = vunpack.c.l.bf16 %v37
    %v51 = vunpack.c.h.bf16 %v37
    %v52 = vunpack.c.l.bf16 %v38
    %v53 = vunpack.c.h.bf16 %v38
    %v54 = vunpack.c.l.bf16 %v39
    %v55 = vunpack.c.h.bf16 %v39
    %v56 = vsub.f32 %v16, %v40
    %v57 = vsub.f32 %v17, %v41
    %v58 = vsub.f32 %v18, %v42
    %v59 = vsub.f32 %v19, %v43
    %v60 = vsub.f32 %v20, %v44
    %v61 = vsub.f32 %v21, %v45
    %v62 = vsub.f32 %v22, %v46
    %v63 = vsub.f32 %v23, %v47
    %v64 = vsub.f32 %v24, %v48
    %v65 = vsub.f32 %v25, %v49
    %v66 = vsub.f32 %v26, %v50
    %v67 = vsub.f32 %v27, %v51
    %v68 = vsub.f32 %v28, %v52
    %v69 = vsub.f32 %v29, %v53
    %v70 = vsub.f32 %v30, %v54
    %v71 = vsub.f32 %v31, %v55
    %v72 = vpack.c.bf16 %v57, %v56
    %v73 = vpack.c.bf16 %v59, %v58
    %v74 = vpack.c.bf16 %v61, %v60
    %v75 = vpack.c.bf16 %v63, %v62
    %v76 = vpack.c.bf16 %v65, %v64
    %v77 = vpack.c.bf16 %v67, %v66
    %v78 = vpack.c.bf16 %v69, %v68
    %v79 = vpack.c.bf16 %v71, %v70
    %v80 = vld [vmem:[%s1] sm:$0xf]
    %v81 = vld [vmem:[%s1 + $0x4] sm:$0xf]
    %v82 = vld [vmem:[%s2] sm:$0xf]
    %v83 = vld [vmem:[%s2 + $0x4] sm:$0xf]
    %v86 = vunpack.c.l.b16 %v82
    %v87 = vunpack.c.l.b16 %v83
    %v88 = vpack.c.b16 %v87, %v86
    %vm90 = vcmask 130048
    %v92 = vsel %vm90, %v32, 0
    %v95 = vsel %vm90, %v33, 0
    %v98 = vsel %vm90, %v34, 0
    %v101 = vsel %vm90, %v35, 0
    %v104 = vsel %vm90, %v36, 0
    %v107 = vsel %vm90, %v37, 0
    %v110 = vsel %vm90, %v38, 0
    %v113 = vsel %vm90, %v39, 0
    %115 = vmatprep.subr.bf16.mxu0 0
    %116 = vmatpush1.bf16.msra.mxu0 0
    %117 = vmatprep.subr.bf16.mxu0 0
    %118 = vmatpush1.bf16.msra.mxu0 0
    %119 = vmatprep.subr.bf16.mxu0 0
    %120 = vmatpush1.bf16.msra.mxu0 0
    %121 = vmatprep.subr.bf16.mxu0 0
    %122 = vmatpush1.bf16.msra.mxu0 0
    %123 = vmatprep.subr.bf16.mxu0 0
    %124 = vmatpush1.bf16.msra.mxu0 0
    %125 = vmatprep.subr.bf16.mxu0 0
    %126 = vmatpush1.bf16.msra.mxu0 0
    %127 = vmatprep.subr.bf16.mxu0 0
    %128 = vmatpush1.bf16.msra.mxu0 0
    %129 = vmatprep.subr.bf16.mxu0 0
    %130 = vmatpush1.bf16.msra.mxu0 %v88
    %131 = vmatprep.subr.bf16.mxu0 0
    %132 = vmatpush2.bf16.msra.mxu0 0
    %133 = vmatprep.subr.bf16.mxu0 0
    %134 = vmatpush2.bf16.msra.mxu0 0
    %135 = vmatprep.subr.bf16.mxu0 0
    %136 = vmatpush2.bf16.msra.mxu0 0
    %137 = vmatprep.subr.bf16.mxu0 0
    %138 = vmatpush2.bf16.msra.mxu0 0
    %139 = vmatprep.subr.bf16.mxu0 0
    %140 = vmatpush2.bf16.msra.mxu0 0
    %141 = vmatprep.subr.bf16.mxu0 0
    %142 = vmatpush2.bf16.msra.mxu0 0
    %143 = vmatprep.subr.bf16.mxu0 0
    %144 = vmatpush2.bf16.msra.mxu0 0
    %145 = vmatprep.subr.bf16.mxu0 0
    %146 = vmatpush2.bf16.msra.mxu0 0
    %147 = vmatprep.mubr.bf16.mxu0 0
    %148 = vmatmul.mubr.bf16.gmra.mxu0 %v92
    %v149 = vpop.f32.mrf.mxu0
    %v150 = vadd.f32 0.0, %v149
    %v151 = vpop.f32.mrf.mxu0
    %v152 = vpop.f32.mrf.mxu0
    %v153 = vadd.f32 0.0, %v152
    %v154 = vpop.f32.mrf.mxu0
    %155 = vmatprep.mubr.bf16.mxu0 0
    %156 = vmatmul.mubr.bf16.gmra.mxu0 %v95
    %v157 = vpop.f32.mrf.mxu0
    %v158 = vadd.f32 0.0, %v157
    %v159 = vpop.f32.mrf.mxu0
    %v160 = vpop.f32.mrf.mxu0
    %v161 = vadd.f32 0.0, %v160
    %v162 = vpop.f32.mrf.mxu0
    %163 = vmatprep.mubr.bf16.mxu0 0
    %164 = vmatmul.mubr.bf16.gmra.mxu0 %v98
    %v165 = vpop.f32.mrf.mxu0
    %v166 = vadd.f32 0.0, %v165
    %v167 = vpop.f32.mrf.mxu0
    %v168 = vpop.f32.mrf.mxu0
    %v169 = vadd.f32 0.0, %v168
    %v170 = vpop.f32.mrf.mxu0
    %171 = vmatprep.mubr.bf16.mxu0 0
    %172 = vmatmul.mubr.bf16.gmra.mxu0 %v101
    %v173 = vpop.f32.mrf.mxu0
    %v174 = vadd.f32 0.0, %v173
    %v175 = vpop.f32.mrf.mxu0
    %v176 = vpop.f32.mrf.mxu0
    %v177 = vadd.f32 0.0, %v176
    %v178 = vpop.f32.mrf.mxu0
    %179 = vmatprep.mubr.bf16.mxu0 0
    %180 = vmatmul.mubr.bf16.gmra.mxu0 %v104
    %v181 = vpop.f32.mrf.mxu0
    %v182 = vadd.f32 0.0, %v181
    %v183 = vpop.f32.mrf.mxu0
    %v184 = vpop.f32.mrf.mxu0
    %v185 = vadd.f32 0.0, %v184
    %v186 = vpop.f32.mrf.mxu0
    %187 = vmatprep.mubr.bf16.mxu0 0
    %188 = vmatmul.mubr.bf16.gmra.mxu0 %v107
    %v189 = vpop.f32.mrf.mxu0
    %v190 = vadd.f32 0.0, %v189
    %v191 = vpop.f32.mrf.mxu0
    %v192 = vpop.f32.mrf.mxu0
    %v193 = vadd.f32 0.0, %v192
    %v194 = vpop.f32.mrf.mxu0
    %195 = vmatprep.mubr.bf16.mxu0 0
    %196 = vmatmul.mubr.bf16.gmra.mxu0 %v110
    %v197 = vpop.f32.mrf.mxu0
    %v198 = vadd.f32 0.0, %v197
    %v199 = vpop.f32.mrf.mxu0
    %v200 = vpop.f32.mrf.mxu0
    %v201 = vadd.f32 0.0, %v200
    %v202 = vpop.f32.mrf.mxu0
    %203 = vmatprep.mubr.bf16.mxu0 0
    %204 = vmatmul.mubr.bf16.gmra.mxu0 %v113
    %v205 = vpop.f32.mrf.mxu0
    %v206 = vadd.f32 0.0, %v205
    %v207 = vpop.f32.mrf.mxu0
    %v208 = vpop.f32.mrf.mxu0
    %v209 = vadd.f32 0.0, %v208
    %v210 = vpop.f32.mrf.mxu0
    %211 = vdwg.mxu0
    %v214 = vunpack.c.l.b16 %v80
    %v215 = vunpack.c.l.b16 %v81
    %v216 = vpack.c.b16 %v215, %v214
    %218 = vmatprep.subr.bf16.mxu0 0
    %219 = vmatpush1.bf16.msra.mxu0 0
    %220 = vmatprep.subr.bf16.mxu0 0
    %221 = vmatpush1.bf16.msra.mxu0 0
    %222 = vmatprep.subr.bf16.mxu0 0
    %223 = vmatpush1.bf16.msra.mxu0 0
    %224 = vmatprep.subr.bf16.mxu0 0
    %225 = vmatpush1.bf16.msra.mxu0 0
    %226 = vmatprep.subr.bf16.mxu0 0
    %227 = vmatpush1.bf16.msra.mxu0 0
    %228 = vmatprep.subr.bf16.mxu0 0
    %229 = vmatpush1.bf16.msra.mxu0 0
    %230 = vmatprep.subr.bf16.mxu0 0
    %231 = vmatpush1.bf16.msra.mxu0 0
    %232 = vmatprep.subr.bf16.mxu0 0
    %233 = vmatpush1.bf16.msra.mxu0 %v216
    %234 = vmatprep.subr.bf16.mxu0 0
    %235 = vmatpush2.bf16.msra.mxu0 0
    %236 = vmatprep.subr.bf16.mxu0 0
    %237 = vmatpush2.bf16.msra.mxu0 0
    %238 = vmatprep.subr.bf16.mxu0 0
    %239 = vmatpush2.bf16.msra.mxu0 0
    %240 = vmatprep.subr.bf16.mxu0 0
    %241 = vmatpush2.bf16.msra.mxu0 0
    %242 = vmatprep.subr.bf16.mxu0 0
    %243 = vmatpush2.bf16.msra.mxu0 0
    %244 = vmatprep.subr.bf16.mxu0 0
    %245 = vmatpush2.bf16.msra.mxu0 0
    %246 = vmatprep.subr.bf16.mxu0 0
    %247 = vmatpush2.bf16.msra.mxu0 0
    %248 = vmatprep.subr.bf16.mxu0 0
    %249 = vmatpush2.bf16.msra.mxu0 0
    %250 = vmatprep.mubr.bf16.mxu0 0
    %251 = vmatmul.mubr.bf16.gmra.mxu0 %v92
    %v252 = vpop.f32.mrf.mxu0
    %v253 = vadd.f32 %v150, %v252
    %v254 = vpop.f32.mrf.mxu0
    %v255 = vpop.f32.mrf.mxu0
    %v256 = vadd.f32 %v153, %v255
    %v257 = vpop.f32.mrf.mxu0
    %258 = vmatprep.mubr.bf16.mxu0 0
    %259 = vmatmul.mubr.bf16.gmra.mxu0 %v95
    %v260 = vpop.f32.mrf.mxu0
    %v261 = vadd.f32 %v158, %v260
    %v262 = vpop.f32.mrf.mxu0
    %v263 = vpop.f32.mrf.mxu0
    %v264 = vadd.f32 %v161, %v263
    %v265 = vpop.f32.mrf.mxu0
    %266 = vmatprep.mubr.bf16.mxu0 0
    %267 = vmatmul.mubr.bf16.gmra.mxu0 %v98
    %v268 = vpop.f32.mrf.mxu0
    %v269 = vadd.f32 %v166, %v268
    %v270 = vpop.f32.mrf.mxu0
    %v271 = vpop.f32.mrf.mxu0
    %v272 = vadd.f32 %v169, %v271
    %v273 = vpop.f32.mrf.mxu0
    %274 = vmatprep.mubr.bf16.mxu0 0
    %275 = vmatmul.mubr.bf16.gmra.mxu0 %v101
    %v276 = vpop.f32.mrf.mxu0
    %v277 = vadd.f32 %v174, %v276
    %v278 = vpop.f32.mrf.mxu0
    %v279 = vpop.f32.mrf.mxu0
    %v280 = vadd.f32 %v177, %v279
    %v281 = vpop.f32.mrf.mxu0
    %282 = vmatprep.mubr.bf16.mxu0 0
    %283 = vmatmul.mubr.bf16.gmra.mxu0 %v104
    %v284 = vpop.f32.mrf.mxu0
    %v285 = vadd.f32 %v182, %v284
    %v286 = vpop.f32.mrf.mxu0
    %v287 = vpop.f32.mrf.mxu0
    %v288 = vadd.f32 %v185, %v287
    %v289 = vpop.f32.mrf.mxu0
    %290 = vmatprep.mubr.bf16.mxu0 0
    %291 = vmatmul.mubr.bf16.gmra.mxu0 %v107
    %v292 = vpop.f32.mrf.mxu0
    %v293 = vadd.f32 %v190, %v292
    %v294 = vpop.f32.mrf.mxu0
    %v295 = vpop.f32.mrf.mxu0
    %v296 = vadd.f32 %v193, %v295
    %v297 = vpop.f32.mrf.mxu0
    %298 = vmatprep.mubr.bf16.mxu0 0
    %299 = vmatmul.mubr.bf16.gmra.mxu0 %v110
    %v300 = vpop.f32.mrf.mxu0
    %v301 = vadd.f32 %v198, %v300
    %v302 = vpop.f32.mrf.mxu0
    %v303 = vpop.f32.mrf.mxu0
    %v304 = vadd.f32 %v201, %v303
    %v305 = vpop.f32.mrf.mxu0
    %306 = vmatprep.mubr.bf16.mxu0 0
    %307 = vmatmul.mubr.bf16.gmra.mxu0 %v113
    %v308 = vpop.f32.mrf.mxu0
    %v309 = vadd.f32 %v206, %v308
    %v310 = vpop.f32.mrf.mxu0
    %v311 = vpop.f32.mrf.mxu0
    %v312 = vadd.f32 %v209, %v311
    %v313 = vpop.f32.mrf.mxu0
    %314 = vdwg.mxu0
    %v316 = vsel %vm90, %v72, 0
    %v319 = vsel %vm90, %v73, 0
    %v322 = vsel %vm90, %v74, 0
    %v325 = vsel %vm90, %v75, 0
    %v328 = vsel %vm90, %v76, 0
    %v331 = vsel %vm90, %v77, 0
    %v334 = vsel %vm90, %v78, 0
    %v337 = vsel %vm90, %v79, 0
    %339 = vmatprep.subr.bf16.mxu0 0
    %340 = vmatpush1.bf16.msra.mxu0 0
    %341 = vmatprep.subr.bf16.mxu0 0
    %342 = vmatpush1.bf16.msra.mxu0 0
    %343 = vmatprep.subr.bf16.mxu0 0
    %344 = vmatpush1.bf16.msra.mxu0 0
    %345 = vmatprep.subr.bf16.mxu0 0
    %346 = vmatpush1.bf16.msra.mxu0 0
    %347 = vmatprep.subr.bf16.mxu0 0
    %348 = vmatpush1.bf16.msra.mxu0 0
    %349 = vmatprep.subr.bf16.mxu0 0
    %350 = vmatpush1.bf16.msra.mxu0 0
    %351 = vmatprep.subr.bf16.mxu0 0
    %352 = vmatpush1.bf16.msra.mxu0 0
    %353 = vmatprep.subr.bf16.mxu0 0
    %354 = vmatpush1.bf16.msra.mxu0 %v216
    %355 = vmatprep.subr.bf16.mxu0 0
    %356 = vmatpush2.bf16.msra.mxu0 0
    %357 = vmatprep.subr.bf16.mxu0 0
    %358 = vmatpush2.bf16.msra.mxu0 0
    %359 = vmatprep.subr.bf16.mxu0 0
    %360 = vmatpush2.bf16.msra.mxu0 0
    %361 = vmatprep.subr.bf16.mxu0 0
    %362 = vmatpush2.bf16.msra.mxu0 0
    %363 = vmatprep.subr.bf16.mxu0 0
    %364 = vmatpush2.bf16.msra.mxu0 0
    %365 = vmatprep.subr.bf16.mxu0 0
    %366 = vmatpush2.bf16.msra.mxu0 0
    %367 = vmatprep.subr.bf16.mxu0 0
    %368 = vmatpush2.bf16.msra.mxu0 0
    %369 = vmatprep.subr.bf16.mxu0 0
    %370 = vmatpush2.bf16.msra.mxu0 0
    %371 = vmatprep.mubr.bf16.mxu0 0
    %372 = vmatmul.mubr.bf16.gmra.mxu0 %v316
    %v373 = vpop.f32.mrf.mxu0
    %v374 = vadd.f32 0.0, %v373
    %v375 = vpop.f32.mrf.mxu0
    %v376 = vpop.f32.mrf.mxu0
    %v377 = vadd.f32 0.0, %v376
    %v378 = vpop.f32.mrf.mxu0
    %379 = vmatprep.mubr.bf16.mxu0 0
    %380 = vmatmul.mubr.bf16.gmra.mxu0 %v319
    %v381 = vpop.f32.mrf.mxu0
    %v382 = vadd.f32 0.0, %v381
    %v383 = vpop.f32.mrf.mxu0
    %v384 = vpop.f32.mrf.mxu0
    %v385 = vadd.f32 0.0, %v384
    %v386 = vpop.f32.mrf.mxu0
    %387 = vmatprep.mubr.bf16.mxu0 0
    %388 = vmatmul.mubr.bf16.gmra.mxu0 %v322
    %v389 = vpop.f32.mrf.mxu0
    %v390 = vadd.f32 0.0, %v389
    %v391 = vpop.f32.mrf.mxu0
    %v392 = vpop.f32.mrf.mxu0
    %v393 = vadd.f32 0.0, %v392
    %v394 = vpop.f32.mrf.mxu0
    %395 = vmatprep.mubr.bf16.mxu0 0
    %396 = vmatmul.mubr.bf16.gmra.mxu0 %v325
    %v397 = vpop.f32.mrf.mxu0
    %v398 = vadd.f32 0.0, %v397
    %v399 = vpop.f32.mrf.mxu0
    %v400 = vpop.f32.mrf.mxu0
    %v401 = vadd.f32 0.0, %v400
    %v402 = vpop.f32.mrf.mxu0
    %403 = vmatprep.mubr.bf16.mxu0 0
    %404 = vmatmul.mubr.bf16.gmra.mxu0 %v328
    %v405 = vpop.f32.mrf.mxu0
    %v406 = vadd.f32 0.0, %v405
    %v407 = vpop.f32.mrf.mxu0
    %v408 = vpop.f32.mrf.mxu0
    %v409 = vadd.f32 0.0, %v408
    %v410 = vpop.f32.mrf.mxu0
    %411 = vmatprep.mubr.bf16.mxu0 0
    %412 = vmatmul.mubr.bf16.gmra.mxu0 %v331
    %v413 = vpop.f32.mrf.mxu0
    %v414 = vadd.f32 0.0, %v413
    %v415 = vpop.f32.mrf.mxu0
    %v416 = vpop.f32.mrf.mxu0
    %v417 = vadd.f32 0.0, %v416
    %v418 = vpop.f32.mrf.mxu0
    %419 = vmatprep.mubr.bf16.mxu0 0
    %420 = vmatmul.mubr.bf16.gmra.mxu0 %v334
    %v421 = vpop.f32.mrf.mxu0
    %v422 = vadd.f32 0.0, %v421
    %v423 = vpop.f32.mrf.mxu0
    %v424 = vpop.f32.mrf.mxu0
    %v425 = vadd.f32 0.0, %v424
    %v426 = vpop.f32.mrf.mxu0
    %427 = vmatprep.mubr.bf16.mxu0 0
    %428 = vmatmul.mubr.bf16.gmra.mxu0 %v337
    %v429 = vpop.f32.mrf.mxu0
    %v430 = vadd.f32 0.0, %v429
    %v431 = vpop.f32.mrf.mxu0
    %v432 = vpop.f32.mrf.mxu0
    %v433 = vadd.f32 0.0, %v432
    %v434 = vpop.f32.mrf.mxu0
    %435 = vdwg.mxu0
    %v436 = vadd.f32 %v253, %v374
    %v437 = vadd.f32 %v256, %v377
    %v438 = vadd.f32 %v261, %v382
    %v439 = vadd.f32 %v264, %v385
    %v440 = vadd.f32 %v269, %v390
    %v441 = vadd.f32 %v272, %v393
    %v442 = vadd.f32 %v277, %v398
    %v443 = vadd.f32 %v280, %v401
    %v444 = vadd.f32 %v285, %v406
    %v445 = vadd.f32 %v288, %v409
    %v446 = vadd.f32 %v293, %v414
    %v447 = vadd.f32 %v296, %v417
    %v448 = vadd.f32 %v301, %v422
    %v449 = vadd.f32 %v304, %v425
    %v450 = vadd.f32 %v309, %v430
    %v451 = vadd.f32 %v312, %v433
    %452 = vst [vmem:[#allocation2] sm:$0xff] %v436
    %453 = vst [vmem:[#allocation2 + $0x8] sm:$0xff] %v437
    %454 = vst [vmem:[#allocation2 + $0x10] sm:$0xff] %v438
    %455 = vst [vmem:[#allocation2 + $0x18] sm:$0xff] %v439
    %456 = vst [vmem:[#allocation2 + $0x20] sm:$0xff] %v440
    %457 = vst [vmem:[#allocation2 + $0x28] sm:$0xff] %v441
    %458 = vst [vmem:[#allocation2 + $0x30] sm:$0xff] %v442
    %459 = vst [vmem:[#allocation2 + $0x38] sm:$0xff] %v443
    %460 = vst [vmem:[#allocation2 + $0x40] sm:$0xff] %v444
    %461 = vst [vmem:[#allocation2 + $0x48] sm:$0xff] %v445
    %462 = vst [vmem:[#allocation2 + $0x50] sm:$0xff] %v446
    %463 = vst [vmem:[#allocation2 + $0x58] sm:$0xff] %v447
    %464 = vst [vmem:[#allocation2 + $0x60] sm:$0xff] %v448
    %465 = vst [vmem:[#allocation2 + $0x68] sm:$0xff] %v449
    %466 = vst [vmem:[#allocation2 + $0x70] sm:$0xff] %v450
    %467 = vst [vmem:[#allocation2 + $0x78] sm:$0xff] %v451
    // Predicated region
    $region14: #{tpu_custom_call.1} parent=1 // pred_check
      _
    $region15: #{tpu_custom_call.1} parent=1 // pred_check_branch
      %469 = sbr.rel (0) target = $region17
    $region16: #{tpu_custom_call.1} parent=1 // pred_region
      %s471 = ssub.s32 2048, 2048
      %472 = vsyncadd [#allocation3], %s471
      %s473 = sshll.u32 [#allocation2], 4
      %s474 = int_to_ptr.vmem [resolvable:$true] %s473
      %479 = dma.vmem_to_hbm [thread:$0]  %s474, 2048, %s3, [#allocation3], 128, 128, 8
    $region17: #{tpu_custom_call.1} parent=1 // pred_fallthru
      _
    // Predicated region
    $region18: #{tpu_custom_call.1} parent=1 // pred_check
      _
    $region19: #{tpu_custom_call.1} parent=1 // pred_check_branch
      %481 = sbr.rel (0) target = $region21
    $region20: #{tpu_custom_call.1} parent=1 // pred_region
      %482 = dma.done [#allocation3], 2048
    $region21: #{tpu_custom_call.1} parent=1 // pred_fallthru
      _
    %483 = vsyncpa [#allocation3], 1

</llo_original>
